<compile_context>
chip_gen: v7x
topology: tpu7x:2x2x1
jax: 0.10.0
libtpu: 0.0.40
codegen_flags: <defaults>
</compile_context>

<pallas_src>
import functools

import numpy as np
import jax
import jax.numpy as jnp
from jax.experimental import pallas as pl
from jax.experimental.pallas import tpu as pltpu


def _fm_kernel(idx_ref, table_ref, bias_ref, out_ref, *, embed_dim):
    """One lane-dense batch tile of the fused FM forward.

    idx_ref  : (F, TB)        int32   per-field global row indices, batch on lanes
    table_ref: (C_pad, V_pad) float32 augmented table rows = [E^T ; (E*E)^T ; w^T ; 0]
    bias_ref : (1, 1)         float32 global bias (SMEM)
    out_ref  : (1, TB)        float32 FM output, lane-dense
    """
    n_fields, tb = idx_ref.shape
    v_pad = table_ref.shape[1]
    d = embed_dim

    idx = idx_ref[...]                                            # (F, TB) int32

    # Multi-hot "gather matrix": mh[v, b] = #fields whose index equals v.
    # Built with F compare+add passes (VPU); field ranges are disjoint so the
    # entries are 0/1, but the math below stays correct even with duplicates.
    row_ids = jax.lax.broadcasted_iota(jnp.int32, (v_pad, tb), 0)
    mh = (row_ids == idx[0:1, :]).astype(jnp.float32)
    for f in range(1, n_fields):                                  # static unroll
        mh = mh + (row_ids == idx[f:f + 1, :]).astype(jnp.float32)

    # Single MXU matmul performs the embedding gather + all field reductions:
    #   res[0:D]   = sum_f e_fd        (S)
    #   res[D:2D]  = sum_f e_fd^2      (Q)
    #   res[2D]    = sum_f w_f         (first-order term)
    res = jnp.dot(table_ref[...], mh,
                  preferred_element_type=jnp.float32)             # (C_pad, TB)

    s = res[0:d, :]                                               # (D, TB)
    q = res[d:2 * d, :]                                           # (D, TB)
    lin = res[2 * d:2 * d + 1, :]                                 # (1, TB)
    second = 0.5 * jnp.sum(s * s - q, axis=0, keepdims=True)      # (1, TB)
    out_ref[...] = second + lin + bias_ref[0, 0]


def _round_up(x, m):
    return ((x + m - 1) // m) * m


def _vmem_budget_bytes():
    """Per-call VMEM budget used for tile sizing (generation aware, conservative)."""
    try:
        cap = pltpu.get_tpu_info().vmem_capacity_bytes   # 128 MiB v5e/v6e, 64 MiB v7x
    except Exception:                                    # non-TPU / older-jax fallback
        cap = 64 << 20
    # Stay under the smallest default scoped-VMEM limit (16 MiB on v5e) so this
    # kernel never needs an explicit vmem_limit_bytes bump.
    return min(cap // 4, 16 << 20)


def _choose_batch_tile(b_pad, n_fields, c_pad, v_pad, budget):
    """Largest lane tile (multiple of 128, divides b_pad) whose working set fits."""
    def step_bytes(tb):
        return (2 * n_fields * tb * 4        # idx tile (double-buffered DMA)
                + 2 * tb * 4                 # output tile (double-buffered DMA)
                + 2 * c_pad * v_pad * 4      # resident augmented table
                + v_pad * tb * 4             # multi-hot matmul operand
                + 2 * c_pad * tb * 4)        # matmul result + headroom

    best = 128
    tb = 128
    # Cap at 1024 lanes to keep the (V_pad, TB) intermediate / vreg pressure sane.
    while tb <= min(b_pad, 1024):
        if b_pad % tb == 0 and step_bytes(tb) <= budget:
            best = tb
        tb *= 2
    return best


def fm_forward(x_idx, embed_table, linear_w, bias, field_offsets):
    """x_idx: (B, F) int32 per-field categorical indices. Returns (B,) float32."""
    B, F = x_idx.shape
    V, D = embed_table.shape

    # Augmented, pre-transposed table: rows [E^T ; (E*E)^T ; w^T].  O(V*D)
    # one-time work on the parameters only (batch independent, tiny).
    aug = jnp.concatenate(
        [embed_table.T, (embed_table * embed_table).T, linear_w.T], axis=0)  # (2D+1, V)
    C = 2 * D + 1
    C_pad = _round_up(C, 8)
    V_pad = _round_up(V, 128)
    aug = jnp.pad(aug, ((0, C_pad - C), (0, V_pad - V)))

    budget = _vmem_budget_bytes()
    assert 2 * C_pad * V_pad * 4 <= budget, (
        "embedding table too large for the VMEM-resident path; needs the "
        "scalar-prefetch DMA-gather variant (TODO(synk))")

    # Batch lives on the lane axis, padded to a multiple of 128.
    B_pad = _round_up(B, 128)
    TB = _choose_batch_tile(B_pad, F, C_pad, V_pad, budget)

    # Offset per-field indices into the flat table, transposed (F, B_pad).
    idx_t = x_idx.T.astype(jnp.int32) + field_offsets[:, None].astype(jnp.int32)
    idx_t = jnp.pad(idx_t, ((0, 0), (0, B_pad - B)))   # padded lanes -> row 0 (valid)
    bias2d = bias.reshape(1, 1).astype(jnp.float32)

    kernel = functools.partial(_fm_kernel, embed_dim=D)

    out = pl.pallas_call(
        kernel,
        out_shape=jax.ShapeDtypeStruct((1, B_pad), jnp.float32),
        grid=(B_pad // TB,),
        in_specs=[
            pl.BlockSpec((F, TB), lambda i: (0, i)),            # index tile (streams)
            pl.BlockSpec((C_pad, V_pad), lambda i: (0, 0)),     # table (VMEM-resident)
            pl.BlockSpec(memory_space=pltpu.MemorySpace.SMEM),  # scalar bias
        ],
        out_specs=pl.BlockSpec((1, TB), lambda i: (0, i)),
        compiler_params=pltpu.CompilerParams(
            dimension_semantics=("parallel",)),
    )(idx_t, aug, bias2d)

    # Padded lanes hold garbage (they gathered real row 0); slice them off.
    # (Equivalent to the module's `.squeeze(1)` on the (B, 1) result.)
    return out[0, :B]


def reference_fm(x_idx, embed_table, linear_w, bias, field_offsets):
    idx = x_idx + field_offsets[None, :]
    emb = jnp.take(embed_table, idx, axis=0)
    lin = jnp.sum(jnp.take(linear_w[:, 0], idx, axis=0), axis=1) + bias[0]
    s = jnp.sum(emb, axis=1)
    ix = 0.5 * jnp.sum(s * s - jnp.sum(emb * emb, axis=1), axis=1)
    return lin + ix


if __name__ == "__main__":
    # Synthetic "opt": field_dims and embed dim.
    field_dims = [10, 20, 30, 40]       # num_fields = 4, sum = 100
    embed_dim = 16
    batch = 500                          # exercises padding (->512) and tiling
    num_fields = len(field_dims)
    total_features = int(np.sum(field_dims))
    field_offsets = jnp.asarray(
        np.concatenate(([0], np.cumsum(field_dims)[:-1])), dtype=jnp.int32)

    key = jax.random.PRNGKey(0)
    k_emb, k_lin, k_bias, k_x = jax.random.split(key, 4)

    # Deterministic parameter init (matches module shapes):
    #   embedding.embedding.weight : (sum(field_dims), embed_dim)
    #   linear.fc.weight           : (sum(field_dims), 1)
    #   linear.bias                : (1,)
    embed_table = jax.random.normal(k_emb, (total_features, embed_dim),
                                    dtype=jnp.float32) * 0.1
    linear_w = jax.random.normal(k_lin, (total_features, 1),
                                 dtype=jnp.float32) * 0.1
    bias = jax.random.normal(k_bias, (1,), dtype=jnp.float32)

    # Input: Long tensor (batch, num_fields) of per-field categorical indices.
    x = jnp.stack(
        [jax.random.randint(jax.random.fold_in(k_x, f), (batch,), 0, field_dims[f])
         for f in range(num_fields)], axis=1).astype(jnp.int32)

    y = jax.jit(fm_forward)(x, embed_table, linear_w, bias, field_offsets)
    jax.block_until_ready(y)

    y_ref = reference_fm(x, embed_table, linear_w, bias, field_offsets)
    np.testing.assert_allclose(np.asarray(y), np.asarray(y_ref),
                               rtol=1e-5, atol=1e-5)
    assert y.shape == (batch,)
    print("KERNEL_OK")
</pallas_src>

<mosaic_0001>
module attributes {stable_mosaic.version = 11 : i64} {
  func.func @_fm_kernel(%arg0: i32, %arg1: memref<4x512xi32, #tpu.memory_space<vmem>>, %arg2: memref<40x128xf32, #tpu.memory_space<vmem>>, %arg3: memref<1x1xf32, #tpu.memory_space<smem>>, %arg4: memref<1x512xf32, #tpu.memory_space<vmem>>) attributes {dimension_semantics = [#tpu.dimension_semantics<parallel>], iteration_bounds = array<i64: 1>, scalar_prefetch = 0 : i64, scratch_operands = 0 : i64, tpu.core_type = #tpu.core_type<tc>, window_params = [{transform_indices = @transform_0, window_bounds = array<i64: 4, 512>}, {pipeline_mode = #tpu.pipeline_mode<synchronous>, transform_indices = @transform_1, window_bounds = array<i64: 40, 128>}, {transform_indices = @transform_2, window_bounds = array<i64: 1, 1>}, {transform_indices = @transform_3, window_bounds = array<i64: 1, 512>}]} {
    %c0 = arith.constant 0 : index
    %c0_0 = arith.constant 0 : index
    %0 = vector.load %arg1[%c0, %c0_0] : memref<4x512xi32, #tpu.memory_space<vmem>>, vector<4x512xi32>
    %1 = tpu.iota {dimensions = array<i32: 0>} : vector<128x512xi32>
    %2 = vector.extract_strided_slice %0 {offsets = [0, 0], sizes = [1, 512], strides = [1, 1]} : vector<4x512xi32> to vector<1x512xi32>
    %3 = vector.broadcast %2 : vector<1x512xi32> to vector<128x512xi32>
    %4 = arith.cmpi eq, %1, %3 : vector<128x512xi32>
    %5 = arith.extui %4 : vector<128x512xi1> to vector<128x512xi32>
    %6 = arith.sitofp %5 : vector<128x512xi32> to vector<128x512xf32>
    %7 = vector.extract_strided_slice %0 {offsets = [1, 0], sizes = [1, 512], strides = [1, 1]} : vector<4x512xi32> to vector<1x512xi32>
    %8 = vector.broadcast %7 : vector<1x512xi32> to vector<128x512xi32>
    %9 = arith.cmpi eq, %1, %8 : vector<128x512xi32>
    %10 = arith.extui %9 : vector<128x512xi1> to vector<128x512xi32>
    %11 = arith.sitofp %10 : vector<128x512xi32> to vector<128x512xf32>
    %12 = arith.addf %6, %11 : vector<128x512xf32>
    %13 = vector.extract_strided_slice %0 {offsets = [2, 0], sizes = [1, 512], strides = [1, 1]} : vector<4x512xi32> to vector<1x512xi32>
    %14 = vector.broadcast %13 : vector<1x512xi32> to vector<128x512xi32>
    %15 = arith.cmpi eq, %1, %14 : vector<128x512xi32>
    %16 = arith.extui %15 : vector<128x512xi1> to vector<128x512xi32>
    %17 = arith.sitofp %16 : vector<128x512xi32> to vector<128x512xf32>
    %18 = arith.addf %12, %17 : vector<128x512xf32>
    %19 = vector.extract_strided_slice %0 {offsets = [3, 0], sizes = [1, 512], strides = [1, 1]} : vector<4x512xi32> to vector<1x512xi32>
    %20 = vector.broadcast %19 : vector<1x512xi32> to vector<128x512xi32>
    %21 = arith.cmpi eq, %1, %20 : vector<128x512xi32>
    %22 = arith.extui %21 : vector<128x512xi1> to vector<128x512xi32>
    %23 = arith.sitofp %22 : vector<128x512xi32> to vector<128x512xf32>
    %24 = arith.addf %18, %23 : vector<128x512xf32>
    %c0_1 = arith.constant 0 : index
    %c0_2 = arith.constant 0 : index
    %25 = vector.load %arg2[%c0_1, %c0_2] : memref<40x128xf32, #tpu.memory_space<vmem>>, vector<40x128xf32>
    %cst = arith.constant dense<0.000000e+00> : vector<40x512xf32>
    %26 = tpu.matmul %25, %24, %cst {dimension_numbers = #tpu.dot_dimension_numbers<[1], [0], [0], [1], [0, 0, 1, 1], [], []>} : vector<40x128xf32>, vector<128x512xf32>, vector<40x512xf32> -> vector<40x512xf32>
    %27 = vector.extract_strided_slice %26 {offsets = [0, 0], sizes = [16, 512], strides = [1, 1]} : vector<40x512xf32> to vector<16x512xf32>
    %28 = vector.extract_strided_slice %26 {offsets = [16, 0], sizes = [16, 512], strides = [1, 1]} : vector<40x512xf32> to vector<16x512xf32>
    %29 = vector.extract_strided_slice %26 {offsets = [32, 0], sizes = [1, 512], strides = [1, 1]} : vector<40x512xf32> to vector<1x512xf32>
    %30 = arith.mulf %27, %27 : vector<16x512xf32>
    %31 = arith.subf %30, %28 : vector<16x512xf32>
    %cst_3 = arith.constant dense<0.000000e+00> : vector<512xf32>
    %32 = vector.multi_reduction <add>, %31, %cst_3 [0] : vector<16x512xf32> to vector<512xf32>
    %33 = vector.shape_cast %32 : vector<512xf32> to vector<1x512xf32>
    %cst_4 = arith.constant 5.000000e-01 : f32
    %34 = vector.broadcast %cst_4 : f32 to vector<1x512xf32>
    %35 = arith.mulf %34, %33 : vector<1x512xf32>
    %36 = arith.addf %35, %29 : vector<1x512xf32>
    %c0_5 = arith.constant 0 : index
    %c0_6 = arith.constant 0 : index
    %37 = memref.load %arg3[%c0_5, %c0_6] : memref<1x1xf32, #tpu.memory_space<smem>>
    %38 = vector.broadcast %37 : f32 to vector<1x512xf32>
    %39 = arith.addf %36, %38 : vector<1x512xf32>
    %c0_7 = arith.constant 0 : index
    %c0_8 = arith.constant 0 : index
    %40 = vector.load %arg4[%c0_7, %c0_8] : memref<1x512xf32, #tpu.memory_space<vmem>>, vector<1x512xf32>
    tpu.vector_store %arg4[%c0_7, %c0_8], %39 {strides = array<i32>} : memref<1x512xf32, #tpu.memory_space<vmem>>, vector<1x512xf32>,
    return
  }
  func.func @transform_0(%arg0: i32) -> (i32, i32) {
    %c0_i32 = arith.constant 0 : i32
    %c0_i32_0 = arith.constant 0 : i32
    return %c0_i32, %arg0 : i32, i32
  }
  func.func @transform_1(%arg0: i32) -> (i32, i32) {
    %c0_i32 = arith.constant 0 : i32
    %c0_i32_0 = arith.constant 0 : i32
    %c0_i32_1 = arith.constant 0 : i32
    return %c0_i32, %c0_i32_0 : i32, i32
  }
  func.func @transform_2(%arg0: i32) -> (i32, i32) {
    %c0_i32 = arith.constant 0 : i32
    %c0_i32_0 = arith.constant 0 : i32
    %c0_i32_1 = arith.constant 0 : i32
    return %c0_i32, %c0_i32_0 : i32, i32
  }
  func.func @transform_3(%arg0: i32) -> (i32, i32) {
    %c0_i32 = arith.constant 0 : i32
    %c0_i32_0 = arith.constant 0 : i32
    return %c0_i32, %arg0 : i32, i32
  }
}

</mosaic_0001>

<llo_original>
// kernel: fm_forward.1
$region0: #{fm_forward.1}
  #allocation0 [shape = 'u32[]', space=smem, size = 0x4, offset = 0x4, fixed_abs, tag = 'smem constant byte address 0x4 - core index']
  #allocation1 [shape = 'u32[144,128]{1,0:T(1,128)}', space=vmem, size = 0x12000, scoped, tag = 'internal scratch']
  #allocation2 [shape = 'f32[1,1]{1,0:T(1,128)S(6)}', space=smem, size = 0x200, scoped, tag = 'scoped memory for fm_forward.1']
  %s0 = inlined_call_operand.vmem [shape: s32[4,512], index: 0, kind: input, shape index: {}]
  %s1 = inlined_call_operand.vmem [shape: f32[40,128], index: 1, kind: input, shape index: {}]
  %s2 = inlined_call_operand.<no memory space> [shape: f32[1,1], index: 2, kind: input, shape index: {}]
  %s3 = inlined_call_operand.hbm [shape: f32[1,512], index: 3, kind: output, shape index: {}]
  %s4 = sld [smem:[#allocation0]]
  $region22: #{fm_forward.1} parent=0
    _
  %s6 = ssub.s32 1, %s4
  %s7 = scalar_select 0, %s6, %s4
  %8 = sst [smem:[#allocation2]] %s2
  $region1: #{fm_forward.1} parent=0
    #allocation3 [shape = 'u8[2048]{0}', space=vmem, size = 0x800, scoped, tag = 'output window, operand 0, single buffered']
    #allocation4 [shape = 's32[1]{0}', space=sflag, size = 0x4, scoped, tag = 'scoped memory for fm_forward.1']
    %9 = vsyncpa [#allocation4], 0
    // Predicated region
    $region2: #{fm_forward.1} parent=1 // pred_check
      _
    $region3: #{fm_forward.1} parent=1 // pred_check_branch
      %11 = sbr.rel (0) target = $region5
    $region4: #{fm_forward.1} parent=1 // pred_region
      _
    $region5: #{fm_forward.1} parent=1 // pred_fallthru
      _
    // Predicated region
    $region6: #{fm_forward.1} parent=1 // pred_check
      _
    $region7: #{fm_forward.1} parent=1 // pred_check_branch
      %13 = sbr.rel (0) target = $region9
    $region8: #{fm_forward.1} parent=1 // pred_region
      _
    $region9: #{fm_forward.1} parent=1 // pred_fallthru
      _
    // Predicated region
    $region10: #{fm_forward.1} parent=1 // pred_check
      _
    $region11: #{fm_forward.1} parent=1 // pred_check_branch
      %15 = sbr.rel (0) target = $region13
    $region12: #{fm_forward.1} parent=1 // pred_region
      _
    $region13: #{fm_forward.1} parent=1 // pred_fallthru
      _
    %v16 = vld [vmem:[%s0] sm:$0xff]
    %v17 = vld [vmem:[%s0 + $0x8] sm:$0xff]
    %v18 = vlaneseq
    %v19 = vshrl.u32 %v18, 7
    %v20 = vadd.s32 %v19, 8
    %v21 = vadd.s32 %v19, 16
    %v22 = vadd.s32 %v19, 24
    %v23 = vadd.s32 %v19, 32
    %v24 = vadd.s32 %v19, 40
    %v25 = vadd.s32 %v19, 48
    %v26 = vadd.s32 %v19, 56
    %v27 = vadd.s32 %v19, 64
    %v28 = vadd.s32 %v19, 72
    %v29 = vadd.s32 %v19, 80
    %v30 = vadd.s32 %v19, 88
    %v31 = vadd.s32 %v19, 96
    %v32 = vadd.s32 %v19, 104
    %v33 = vadd.s32 %v19, 112
    %v34 = vadd.s32 %v19, 120
    %v35 = vlaneseq
    %v36 = vshrl.u32 %v35, 7
    %v37 = vsub.s32 0, %v36
    %v38 = vrot.slane %v16, %v37
    %v39 = vlaneseq
    %v40 = vshrl.u32 %v39, 7
    %v41 = vsub.s32 4, %v40
    %v42 = vrot.slane %v16, %v41
    %v43 = vlaneseq
    %v44 = vshrl.u32 %v43, 7
    %v45 = vsub.s32 0, %v44
    %v46 = vrot.slane %v17, %v45
    %v47 = vlaneseq
    %v48 = vshrl.u32 %v47, 7
    %v49 = vsub.s32 4, %v48
    %v50 = vrot.slane %v17, %v49
    %v51 = vlaneseq
    %v52 = vshrl.u32 %v51, 7
    %v53 = vsub.s32 0, %v52
    %v54 = vrot.slane %v38, %v53
    %v55 = vlaneseq
    %v56 = vshrl.u32 %v55, 7
    %v57 = vsub.s32 0, %v56
    %v58 = vrot.slane %v42, %v57
    %v59 = vlaneseq
    %v60 = vshrl.u32 %v59, 7
    %v61 = vsub.s32 0, %v60
    %v62 = vrot.slane %v46, %v61
    %v63 = vlaneseq
    %v64 = vshrl.u32 %v63, 7
    %v65 = vsub.s32 0, %v64
    %v66 = vrot.slane %v50, %v65
    %vm67 = vcmp.eq.s32.totalorder %v19, %v54
    %vm68 = vcmp.eq.s32.totalorder %v19, %v58
    %vm69 = vcmp.eq.s32.totalorder %v19, %v62
    %vm70 = vcmp.eq.s32.totalorder %v19, %v66
    %vm71 = vcmp.eq.s32.totalorder %v20, %v54
    %vm72 = vcmp.eq.s32.totalorder %v20, %v58
    %vm73 = vcmp.eq.s32.totalorder %v20, %v62
    %vm74 = vcmp.eq.s32.totalorder %v20, %v66
    %vm75 = vcmp.eq.s32.totalorder %v21, %v54
    %vm76 = vcmp.eq.s32.totalorder %v21, %v58
    %vm77 = vcmp.eq.s32.totalorder %v21, %v62
    %vm78 = vcmp.eq.s32.totalorder %v21, %v66
    %vm79 = vcmp.eq.s32.totalorder %v22, %v54
    %vm80 = vcmp.eq.s32.totalorder %v22, %v58
    %vm81 = vcmp.eq.s32.totalorder %v22, %v62
    %vm82 = vcmp.eq.s32.totalorder %v22, %v66
    %vm83 = vcmp.eq.s32.totalorder %v23, %v54
    %vm84 = vcmp.eq.s32.totalorder %v23, %v58
    %vm85 = vcmp.eq.s32.totalorder %v23, %v62
    %vm86 = vcmp.eq.s32.totalorder %v23, %v66
    %vm87 = vcmp.eq.s32.totalorder %v24, %v54
    %vm88 = vcmp.eq.s32.totalorder %v24, %v58
    %vm89 = vcmp.eq.s32.totalorder %v24, %v62
    %vm90 = vcmp.eq.s32.totalorder %v24, %v66
    %vm91 = vcmp.eq.s32.totalorder %v25, %v54
    %vm92 = vcmp.eq.s32.totalorder %v25, %v58
    %vm93 = vcmp.eq.s32.totalorder %v25, %v62
    %vm94 = vcmp.eq.s32.totalorder %v25, %v66
    %vm95 = vcmp.eq.s32.totalorder %v26, %v54
    %vm96 = vcmp.eq.s32.totalorder %v26, %v58
    %vm97 = vcmp.eq.s32.totalorder %v26, %v62
    %vm98 = vcmp.eq.s32.totalorder %v26, %v66
    %vm99 = vcmp.eq.s32.totalorder %v27, %v54
    %vm100 = vcmp.eq.s32.totalorder %v27, %v58
    %vm101 = vcmp.eq.s32.totalorder %v27, %v62
    %vm102 = vcmp.eq.s32.totalorder %v27, %v66
    %vm103 = vcmp.eq.s32.totalorder %v28, %v54
    %vm104 = vcmp.eq.s32.totalorder %v28, %v58
    %vm105 = vcmp.eq.s32.totalorder %v28, %v62
    %vm106 = vcmp.eq.s32.totalorder %v28, %v66
    %vm107 = vcmp.eq.s32.totalorder %v29, %v54
    %vm108 = vcmp.eq.s32.totalorder %v29, %v58
    %vm109 = vcmp.eq.s32.totalorder %v29, %v62
    %vm110 = vcmp.eq.s32.totalorder %v29, %v66
    %vm111 = vcmp.eq.s32.totalorder %v30, %v54
    %vm112 = vcmp.eq.s32.totalorder %v30, %v58
    %vm113 = vcmp.eq.s32.totalorder %v30, %v62
    %vm114 = vcmp.eq.s32.totalorder %v30, %v66
    %vm115 = vcmp.eq.s32.totalorder %v31, %v54
    %vm116 = vcmp.eq.s32.totalorder %v31, %v58
    %vm117 = vcmp.eq.s32.totalorder %v31, %v62
    %vm118 = vcmp.eq.s32.totalorder %v31, %v66
    %vm119 = vcmp.eq.s32.totalorder %v32, %v54
    %vm120 = vcmp.eq.s32.totalorder %v32, %v58
    %vm121 = vcmp.eq.s32.totalorder %v32, %v62
    %vm122 = vcmp.eq.s32.totalorder %v32, %v66
    %vm123 = vcmp.eq.s32.totalorder %v33, %v54
    %vm124 = vcmp.eq.s32.totalorder %v33, %v58
    %vm125 = vcmp.eq.s32.totalorder %v33, %v62
    %vm126 = vcmp.eq.s32.totalorder %v33, %v66
    %vm127 = vcmp.eq.s32.totalorder %v34, %v54
    %vm128 = vcmp.eq.s32.totalorder %v34, %v58
    %vm129 = vcmp.eq.s32.totalorder %v34, %v62
    %vm130 = vcmp.eq.s32.totalorder %v34, %v66
    %v131 = vsel %vm67, 1, 0
    %v132 = vsel %vm68, 1, 0
    %v133 = vsel %vm69, 1, 0
    %v134 = vsel %vm70, 1, 0
    %v135 = vsel %vm71, 1, 0
    %v136 = vsel %vm72, 1, 0
    %v137 = vsel %vm73, 1, 0
    %v138 = vsel %vm74, 1, 0
    %v139 = vsel %vm75, 1, 0
    %v140 = vsel %vm76, 1, 0
    %v141 = vsel %vm77, 1, 0
    %v142 = vsel %vm78, 1, 0
    %v143 = vsel %vm79, 1, 0
    %v144 = vsel %vm80, 1, 0
    %v145 = vsel %vm81, 1, 0
    %v146 = vsel %vm82, 1, 0
    %v147 = vsel %vm83, 1, 0
    %v148 = vsel %vm84, 1, 0
    %v149 = vsel %vm85, 1, 0
    %v150 = vsel %vm86, 1, 0
    %v151 = vsel %vm87, 1, 0
    %v152 = vsel %vm88, 1, 0
    %v153 = vsel %vm89, 1, 0
    %v154 = vsel %vm90, 1, 0
    %v155 = vsel %vm91, 1, 0
    %v156 = vsel %vm92, 1, 0
    %v157 = vsel %vm93, 1, 0
    %v158 = vsel %vm94, 1, 0
    %v159 = vsel %vm95, 1, 0
    %v160 = vsel %vm96, 1, 0
    %v161 = vsel %vm97, 1, 0
    %v162 = vsel %vm98, 1, 0
    %v163 = vsel %vm99, 1, 0
    %v164 = vsel %vm100, 1, 0
    %v165 = vsel %vm101, 1, 0
    %v166 = vsel %vm102, 1, 0
    %v167 = vsel %vm103, 1, 0
    %v168 = vsel %vm104, 1, 0
    %v169 = vsel %vm105, 1, 0
    %v170 = vsel %vm106, 1, 0
    %v171 = vsel %vm107, 1, 0
    %v172 = vsel %vm108, 1, 0
    %v173 = vsel %vm109, 1, 0
    %v174 = vsel %vm110, 1, 0
    %v175 = vsel %vm111, 1, 0
    %v176 = vsel %vm112, 1, 0
    %v177 = vsel %vm113, 1, 0
    %v178 = vsel %vm114, 1, 0
    %v179 = vsel %vm115, 1, 0
    %v180 = vsel %vm116, 1, 0
    %v181 = vsel %vm117, 1, 0
    %v182 = vsel %vm118, 1, 0
    %v183 = vsel %vm119, 1, 0
    %v184 = vsel %vm120, 1, 0
    %v185 = vsel %vm121, 1, 0
    %v186 = vsel %vm122, 1, 0
    %v187 = vsel %vm123, 1, 0
    %v188 = vsel %vm124, 1, 0
    %v189 = vsel %vm125, 1, 0
    %v190 = vsel %vm126, 1, 0
    %v191 = vsel %vm127, 1, 0
    %v192 = vsel %vm128, 1, 0
    %v193 = vsel %vm129, 1, 0
    %v194 = vsel %vm130, 1, 0
    %v195 = vcvt.s32.f32 %v131
    %v196 = vcvt.s32.f32 %v132
    %v197 = vcvt.s32.f32 %v133
    %v198 = vcvt.s32.f32 %v134
    %v199 = vcvt.s32.f32 %v135
    %v200 = vcvt.s32.f32 %v136
    %v201 = vcvt.s32.f32 %v137
    %v202 = vcvt.s32.f32 %v138
    %v203 = vcvt.s32.f32 %v139
    %v204 = vcvt.s32.f32 %v140
    %v205 = vcvt.s32.f32 %v141
    %v206 = vcvt.s32.f32 %v142
    %v207 = vcvt.s32.f32 %v143
    %v208 = vcvt.s32.f32 %v144
    %v209 = vcvt.s32.f32 %v145
    %v210 = vcvt.s32.f32 %v146
    %v211 = vcvt.s32.f32 %v147
    %v212 = vcvt.s32.f32 %v148
    %v213 = vcvt.s32.f32 %v149
    %v214 = vcvt.s32.f32 %v150
    %v215 = vcvt.s32.f32 %v151
    %v216 = vcvt.s32.f32 %v152
    %v217 = vcvt.s32.f32 %v153
    %v218 = vcvt.s32.f32 %v154
    %v219 = vcvt.s32.f32 %v155
    %v220 = vcvt.s32.f32 %v156
    %v221 = vcvt.s32.f32 %v157
    %v222 = vcvt.s32.f32 %v158
    %v223 = vcvt.s32.f32 %v159
    %v224 = vcvt.s32.f32 %v160
    %v225 = vcvt.s32.f32 %v161
    %v226 = vcvt.s32.f32 %v162
    %v227 = vcvt.s32.f32 %v163
    %v228 = vcvt.s32.f32 %v164
    %v229 = vcvt.s32.f32 %v165
    %v230 = vcvt.s32.f32 %v166
    %v231 = vcvt.s32.f32 %v167
    %v232 = vcvt.s32.f32 %v168
    %v233 = vcvt.s32.f32 %v169
    %v234 = vcvt.s32.f32 %v170
    %v235 = vcvt.s32.f32 %v171
    %v236 = vcvt.s32.f32 %v172
    %v237 = vcvt.s32.f32 %v173
    %v238 = vcvt.s32.f32 %v174
    %v239 = vcvt.s32.f32 %v175
    %v240 = vcvt.s32.f32 %v176
    %v241 = vcvt.s32.f32 %v177
    %v242 = vcvt.s32.f32 %v178
    %v243 = vcvt.s32.f32 %v179
    %v244 = vcvt.s32.f32 %v180
    %v245 = vcvt.s32.f32 %v181
    %v246 = vcvt.s32.f32 %v182
    %v247 = vcvt.s32.f32 %v183
    %v248 = vcvt.s32.f32 %v184
    %v249 = vcvt.s32.f32 %v185
    %v250 = vcvt.s32.f32 %v186
    %v251 = vcvt.s32.f32 %v187
    %v252 = vcvt.s32.f32 %v188
    %v253 = vcvt.s32.f32 %v189
    %v254 = vcvt.s32.f32 %v190
    %v255 = vcvt.s32.f32 %v191
    %v256 = vcvt.s32.f32 %v192
    %v257 = vcvt.s32.f32 %v193
    %v258 = vcvt.s32.f32 %v194
    %v259 = vlaneseq
    %v260 = vshrl.u32 %v259, 7
    %v261 = vsub.s32 1, %v260
    %v262 = vrot.slane %v16, %v261
    %v263 = vlaneseq
    %v264 = vshrl.u32 %v263, 7
    %v265 = vsub.s32 5, %v264
    %v266 = vrot.slane %v16, %v265
    %v267 = vlaneseq
    %v268 = vshrl.u32 %v267, 7
    %v269 = vsub.s32 1, %v268
    %v270 = vrot.slane %v17, %v269
    %v271 = vlaneseq
    %v272 = vshrl.u32 %v271, 7
    %v273 = vsub.s32 5, %v272
    %v274 = vrot.slane %v17, %v273
    %v275 = vlaneseq
    %v276 = vshrl.u32 %v275, 7
    %v277 = vsub.s32 1, %v276
    %v278 = vrot.slane %v262, %v277
    %v279 = vlaneseq
    %v280 = vshrl.u32 %v279, 7
    %v281 = vsub.s32 1, %v280
    %v282 = vrot.slane %v266, %v281
    %v283 = vlaneseq
    %v284 = vshrl.u32 %v283, 7
    %v285 = vsub.s32 1, %v284
    %v286 = vrot.slane %v270, %v285
    %v287 = vlaneseq
    %v288 = vshrl.u32 %v287, 7
    %v289 = vsub.s32 1, %v288
    %v290 = vrot.slane %v274, %v289
    %vm291 = vcmp.eq.s32.totalorder %v19, %v278
    %vm292 = vcmp.eq.s32.totalorder %v19, %v282
    %vm293 = vcmp.eq.s32.totalorder %v19, %v286
    %vm294 = vcmp.eq.s32.totalorder %v19, %v290
    %vm295 = vcmp.eq.s32.totalorder %v20, %v278
    %vm296 = vcmp.eq.s32.totalorder %v20, %v282
    %vm297 = vcmp.eq.s32.totalorder %v20, %v286
    %vm298 = vcmp.eq.s32.totalorder %v20, %v290
    %vm299 = vcmp.eq.s32.totalorder %v21, %v278
    %vm300 = vcmp.eq.s32.totalorder %v21, %v282
    %vm301 = vcmp.eq.s32.totalorder %v21, %v286
    %vm302 = vcmp.eq.s32.totalorder %v21, %v290
    %vm303 = vcmp.eq.s32.totalorder %v22, %v278
    %vm304 = vcmp.eq.s32.totalorder %v22, %v282
    %vm305 = vcmp.eq.s32.totalorder %v22, %v286
    %vm306 = vcmp.eq.s32.totalorder %v22, %v290
    %vm307 = vcmp.eq.s32.totalorder %v23, %v278
    %vm308 = vcmp.eq.s32.totalorder %v23, %v282
    %vm309 = vcmp.eq.s32.totalorder %v23, %v286
    %vm310 = vcmp.eq.s32.totalorder %v23, %v290
    %vm311 = vcmp.eq.s32.totalorder %v24, %v278
    %vm312 = vcmp.eq.s32.totalorder %v24, %v282
    %vm313 = vcmp.eq.s32.totalorder %v24, %v286
    %vm314 = vcmp.eq.s32.totalorder %v24, %v290
    %vm315 = vcmp.eq.s32.totalorder %v25, %v278
    %vm316 = vcmp.eq.s32.totalorder %v25, %v282
    %vm317 = vcmp.eq.s32.totalorder %v25, %v286
    %vm318 = vcmp.eq.s32.totalorder %v25, %v290
    %vm319 = vcmp.eq.s32.totalorder %v26, %v278
    %vm320 = vcmp.eq.s32.totalorder %v26, %v282
    %vm321 = vcmp.eq.s32.totalorder %v26, %v286
    %vm322 = vcmp.eq.s32.totalorder %v26, %v290
    %vm323 = vcmp.eq.s32.totalorder %v27, %v278
    %vm324 = vcmp.eq.s32.totalorder %v27, %v282
    %vm325 = vcmp.eq.s32.totalorder %v27, %v286
    %vm326 = vcmp.eq.s32.totalorder %v27, %v290
    %vm327 = vcmp.eq.s32.totalorder %v28, %v278
    %vm328 = vcmp.eq.s32.totalorder %v28, %v282
    %vm329 = vcmp.eq.s32.totalorder %v28, %v286
    %vm330 = vcmp.eq.s32.totalorder %v28, %v290
    %vm331 = vcmp.eq.s32.totalorder %v29, %v278
    %vm332 = vcmp.eq.s32.totalorder %v29, %v282
    %vm333 = vcmp.eq.s32.totalorder %v29, %v286
    %vm334 = vcmp.eq.s32.totalorder %v29, %v290
    %vm335 = vcmp.eq.s32.totalorder %v30, %v278
    %vm336 = vcmp.eq.s32.totalorder %v30, %v282
    %vm337 = vcmp.eq.s32.totalorder %v30, %v286
    %vm338 = vcmp.eq.s32.totalorder %v30, %v290
    %vm339 = vcmp.eq.s32.totalorder %v31, %v278
    %vm340 = vcmp.eq.s32.totalorder %v31, %v282
    %vm341 = vcmp.eq.s32.totalorder %v31, %v286
    %vm342 = vcmp.eq.s32.totalorder %v31, %v290
    %vm343 = vcmp.eq.s32.totalorder %v32, %v278
    %vm344 = vcmp.eq.s32.totalorder %v32, %v282
    %vm345 = vcmp.eq.s32.totalorder %v32, %v286
    %vm346 = vcmp.eq.s32.totalorder %v32, %v290
    %vm347 = vcmp.eq.s32.totalorder %v33, %v278
    %vm348 = vcmp.eq.s32.totalorder %v33, %v282
    %vm349 = vcmp.eq.s32.totalorder %v33, %v286
    %vm350 = vcmp.eq.s32.totalorder %v33, %v290
    %vm351 = vcmp.eq.s32.totalorder %v34, %v278
    %vm352 = vcmp.eq.s32.totalorder %v34, %v282
    %vm353 = vcmp.eq.s32.totalorder %v34, %v286
    %vm354 = vcmp.eq.s32.totalorder %v34, %v290
    %v355 = vsel %vm291, 1, 0
    %v356 = vsel %vm292, 1, 0
    %v357 = vsel %vm293, 1, 0
    %v358 = vsel %vm294, 1, 0
    %v359 = vsel %vm295, 1, 0
    %v360 = vsel %vm296, 1, 0
    %v361 = vsel %vm297, 1, 0
    %v362 = vsel %vm298, 1, 0
    %v363 = vsel %vm299, 1, 0
    %v364 = vsel %vm300, 1, 0
    %v365 = vsel %vm301, 1, 0
    %v366 = vsel %vm302, 1, 0
    %v367 = vsel %vm303, 1, 0
    %v368 = vsel %vm304, 1, 0
    %v369 = vsel %vm305, 1, 0
    %v370 = vsel %vm306, 1, 0
    %v371 = vsel %vm307, 1, 0
    %v372 = vsel %vm308, 1, 0
    %v373 = vsel %vm309, 1, 0
    %v374 = vsel %vm310, 1, 0
    %v375 = vsel %vm311, 1, 0
    %v376 = vsel %vm312, 1, 0
    %v377 = vsel %vm313, 1, 0
    %v378 = vsel %vm314, 1, 0
    %v379 = vsel %vm315, 1, 0
    %v380 = vsel %vm316, 1, 0
    %v381 = vsel %vm317, 1, 0
    %v382 = vsel %vm318, 1, 0
    %v383 = vsel %vm319, 1, 0
    %v384 = vsel %vm320, 1, 0
    %v385 = vsel %vm321, 1, 0
    %v386 = vsel %vm322, 1, 0
    %v387 = vsel %vm323, 1, 0
    %v388 = vsel %vm324, 1, 0
    %v389 = vsel %vm325, 1, 0
    %v390 = vsel %vm326, 1, 0
    %v391 = vsel %vm327, 1, 0
    %v392 = vsel %vm328, 1, 0
    %v393 = vsel %vm329, 1, 0
    %v394 = vsel %vm330, 1, 0
    %v395 = vsel %vm331, 1, 0
    %v396 = vsel %vm332, 1, 0
    %v397 = vsel %vm333, 1, 0
    %v398 = vsel %vm334, 1, 0
    %v399 = vsel %vm335, 1, 0
    %v400 = vsel %vm336, 1, 0
    %v401 = vsel %vm337, 1, 0
    %v402 = vsel %vm338, 1, 0
    %v403 = vsel %vm339, 1, 0
    %v404 = vsel %vm340, 1, 0
    %v405 = vsel %vm341, 1, 0
    %v406 = vsel %vm342, 1, 0
    %v407 = vsel %vm343, 1, 0
    %v408 = vsel %vm344, 1, 0
    %v409 = vsel %vm345, 1, 0
    %v410 = vsel %vm346, 1, 0
    %v411 = vsel %vm347, 1, 0
    %v412 = vsel %vm348, 1, 0
    %v413 = vsel %vm349, 1, 0
    %v414 = vsel %vm350, 1, 0
    %v415 = vsel %vm351, 1, 0
    %v416 = vsel %vm352, 1, 0
    %v417 = vsel %vm353, 1, 0
    %v418 = vsel %vm354, 1, 0
    %v419 = vcvt.s32.f32 %v355
    %v420 = vcvt.s32.f32 %v356
    %v421 = vcvt.s32.f32 %v357
    %v422 = vcvt.s32.f32 %v358
    %v423 = vcvt.s32.f32 %v359
    %v424 = vcvt.s32.f32 %v360
    %v425 = vcvt.s32.f32 %v361
    %v426 = vcvt.s32.f32 %v362
    %v427 = vcvt.s32.f32 %v363
    %v428 = vcvt.s32.f32 %v364
    %v429 = vcvt.s32.f32 %v365
    %v430 = vcvt.s32.f32 %v366
    %v431 = vcvt.s32.f32 %v367
    %v432 = vcvt.s32.f32 %v368
    %v433 = vcvt.s32.f32 %v369
    %v434 = vcvt.s32.f32 %v370
    %v435 = vcvt.s32.f32 %v371
    %v436 = vcvt.s32.f32 %v372
    %v437 = vcvt.s32.f32 %v373
    %v438 = vcvt.s32.f32 %v374
    %v439 = vcvt.s32.f32 %v375
    %v440 = vcvt.s32.f32 %v376
    %v441 = vcvt.s32.f32 %v377
    %v442 = vcvt.s32.f32 %v378
    %v443 = vcvt.s32.f32 %v379
    %v444 = vcvt.s32.f32 %v380
    %v445 = vcvt.s32.f32 %v381
    %v446 = vcvt.s32.f32 %v382
    %v447 = vcvt.s32.f32 %v383
    %v448 = vcvt.s32.f32 %v384
    %v449 = vcvt.s32.f32 %v385
    %v450 = vcvt.s32.f32 %v386
    %v451 = vcvt.s32.f32 %v387
    %v452 = vcvt.s32.f32 %v388
    %v453 = vcvt.s32.f32 %v389
    %v454 = vcvt.s32.f32 %v390
    %v455 = vcvt.s32.f32 %v391
    %v456 = vcvt.s32.f32 %v392
    %v457 = vcvt.s32.f32 %v393
    %v458 = vcvt.s32.f32 %v394
    %v459 = vcvt.s32.f32 %v395
    %v460 = vcvt.s32.f32 %v396
    %v461 = vcvt.s32.f32 %v397
    %v462 = vcvt.s32.f32 %v398
    %v463 = vcvt.s32.f32 %v399
    %v464 = vcvt.s32.f32 %v400
    %v465 = vcvt.s32.f32 %v401
    %v466 = vcvt.s32.f32 %v402
    %v467 = vcvt.s32.f32 %v403
    %v468 = vcvt.s32.f32 %v404
    %v469 = vcvt.s32.f32 %v405
    %v470 = vcvt.s32.f32 %v406
    %v471 = vcvt.s32.f32 %v407
    %v472 = vcvt.s32.f32 %v408
    %v473 = vcvt.s32.f32 %v409
    %v474 = vcvt.s32.f32 %v410
    %v475 = vcvt.s32.f32 %v411
    %v476 = vcvt.s32.f32 %v412
    %v477 = vcvt.s32.f32 %v413
    %v478 = vcvt.s32.f32 %v414
    %v479 = vcvt.s32.f32 %v415
    %v480 = vcvt.s32.f32 %v416
    %v481 = vcvt.s32.f32 %v417
    %v482 = vcvt.s32.f32 %v418
    %v483 = vadd.f32 %v195, %v419
    %v484 = vadd.f32 %v196, %v420
    %v485 = vadd.f32 %v197, %v421
    %v486 = vadd.f32 %v198, %v422
    %v487 = vadd.f32 %v199, %v423
    %v488 = vadd.f32 %v200, %v424
    %v489 = vadd.f32 %v201, %v425
    %v490 = vadd.f32 %v202, %v426
    %v491 = vadd.f32 %v203, %v427
    %v492 = vadd.f32 %v204, %v428
    %v493 = vadd.f32 %v205, %v429
    %v494 = vadd.f32 %v206, %v430
    %v495 = vadd.f32 %v207, %v431
    %v496 = vadd.f32 %v208, %v432
    %v497 = vadd.f32 %v209, %v433
    %v498 = vadd.f32 %v210, %v434
    %v499 = vadd.f32 %v211, %v435
    %v500 = vadd.f32 %v212, %v436
    %v501 = vadd.f32 %v213, %v437
    %v502 = vadd.f32 %v214, %v438
    %v503 = vadd.f32 %v215, %v439
    %v504 = vadd.f32 %v216, %v440
    %v505 = vadd.f32 %v217, %v441
    %v506 = vadd.f32 %v218, %v442
    %v507 = vadd.f32 %v219, %v443
    %v508 = vadd.f32 %v220, %v444
    %v509 = vadd.f32 %v221, %v445
    %v510 = vadd.f32 %v222, %v446
    %v511 = vadd.f32 %v223, %v447
    %v512 = vadd.f32 %v224, %v448
    %v513 = vadd.f32 %v225, %v449
    %v514 = vadd.f32 %v226, %v450
    %v515 = vadd.f32 %v227, %v451
    %v516 = vadd.f32 %v228, %v452
    %v517 = vadd.f32 %v229, %v453
    %v518 = vadd.f32 %v230, %v454
    %v519 = vadd.f32 %v231, %v455
    %v520 = vadd.f32 %v232, %v456
    %v521 = vadd.f32 %v233, %v457
    %v522 = vadd.f32 %v234, %v458
    %v523 = vadd.f32 %v235, %v459
    %v524 = vadd.f32 %v236, %v460
    %v525 = vadd.f32 %v237, %v461
    %v526 = vadd.f32 %v238, %v462
    %v527 = vadd.f32 %v239, %v463
    %v528 = vadd.f32 %v240, %v464
    %v529 = vadd.f32 %v241, %v465
    %v530 = vadd.f32 %v242, %v466
    %v531 = vadd.f32 %v243, %v467
    %v532 = vadd.f32 %v244, %v468
    %v533 = vadd.f32 %v245, %v469
    %v534 = vadd.f32 %v246, %v470
    %v535 = vadd.f32 %v247, %v471
    %v536 = vadd.f32 %v248, %v472
    %v537 = vadd.f32 %v249, %v473
    %v538 = vadd.f32 %v250, %v474
    %v539 = vadd.f32 %v251, %v475
    %v540 = vadd.f32 %v252, %v476
    %v541 = vadd.f32 %v253, %v477
    %v542 = vadd.f32 %v254, %v478
    %v543 = vadd.f32 %v255, %v479
    %v544 = vadd.f32 %v256, %v480
    %v545 = vadd.f32 %v257, %v481
    %v546 = vadd.f32 %v258, %v482
    %v547 = vlaneseq
    %v548 = vshrl.u32 %v547, 7
    %v549 = vsub.s32 2, %v548
    %v550 = vrot.slane %v16, %v549
    %v551 = vlaneseq
    %v552 = vshrl.u32 %v551, 7
    %v553 = vsub.s32 6, %v552
    %v554 = vrot.slane %v16, %v553
    %v555 = vlaneseq
    %v556 = vshrl.u32 %v555, 7
    %v557 = vsub.s32 2, %v556
    %v558 = vrot.slane %v17, %v557
    %v559 = vlaneseq
    %v560 = vshrl.u32 %v559, 7
    %v561 = vsub.s32 6, %v560
    %v562 = vrot.slane %v17, %v561
    %v563 = vlaneseq
    %v564 = vshrl.u32 %v563, 7
    %v565 = vsub.s32 2, %v564
    %v566 = vrot.slane %v550, %v565
    %v567 = vlaneseq
    %v568 = vshrl.u32 %v567, 7
    %v569 = vsub.s32 2, %v568
    %v570 = vrot.slane %v554, %v569
    %v571 = vlaneseq
    %v572 = vshrl.u32 %v571, 7
    %v573 = vsub.s32 2, %v572
    %v574 = vrot.slane %v558, %v573
    %v575 = vlaneseq
    %v576 = vshrl.u32 %v575, 7
    %v577 = vsub.s32 2, %v576
    %v578 = vrot.slane %v562, %v577
    %vm579 = vcmp.eq.s32.totalorder %v19, %v566
    %vm580 = vcmp.eq.s32.totalorder %v19, %v570
    %vm581 = vcmp.eq.s32.totalorder %v19, %v574
    %vm582 = vcmp.eq.s32.totalorder %v19, %v578
    %vm583 = vcmp.eq.s32.totalorder %v20, %v566
    %vm584 = vcmp.eq.s32.totalorder %v20, %v570
    %vm585 = vcmp.eq.s32.totalorder %v20, %v574
    %vm586 = vcmp.eq.s32.totalorder %v20, %v578
    %vm587 = vcmp.eq.s32.totalorder %v21, %v566
    %vm588 = vcmp.eq.s32.totalorder %v21, %v570
    %vm589 = vcmp.eq.s32.totalorder %v21, %v574
    %vm590 = vcmp.eq.s32.totalorder %v21, %v578
    %vm591 = vcmp.eq.s32.totalorder %v22, %v566
    %vm592 = vcmp.eq.s32.totalorder %v22, %v570
    %vm593 = vcmp.eq.s32.totalorder %v22, %v574
    %vm594 = vcmp.eq.s32.totalorder %v22, %v578
    %vm595 = vcmp.eq.s32.totalorder %v23, %v566
    %vm596 = vcmp.eq.s32.totalorder %v23, %v570
    %vm597 = vcmp.eq.s32.totalorder %v23, %v574
    %vm598 = vcmp.eq.s32.totalorder %v23, %v578
    %vm599 = vcmp.eq.s32.totalorder %v24, %v566
    %vm600 = vcmp.eq.s32.totalorder %v24, %v570
    %vm601 = vcmp.eq.s32.totalorder %v24, %v574
    %vm602 = vcmp.eq.s32.totalorder %v24, %v578
    %vm603 = vcmp.eq.s32.totalorder %v25, %v566
    %vm604 = vcmp.eq.s32.totalorder %v25, %v570
    %vm605 = vcmp.eq.s32.totalorder %v25, %v574
    %vm606 = vcmp.eq.s32.totalorder %v25, %v578
    %vm607 = vcmp.eq.s32.totalorder %v26, %v566
    %vm608 = vcmp.eq.s32.totalorder %v26, %v570
    %vm609 = vcmp.eq.s32.totalorder %v26, %v574
    %vm610 = vcmp.eq.s32.totalorder %v26, %v578
    %vm611 = vcmp.eq.s32.totalorder %v27, %v566
    %vm612 = vcmp.eq.s32.totalorder %v27, %v570
    %vm613 = vcmp.eq.s32.totalorder %v27, %v574
    %vm614 = vcmp.eq.s32.totalorder %v27, %v578
    %vm615 = vcmp.eq.s32.totalorder %v28, %v566
    %vm616 = vcmp.eq.s32.totalorder %v28, %v570
    %vm617 = vcmp.eq.s32.totalorder %v28, %v574
    %vm618 = vcmp.eq.s32.totalorder %v28, %v578
    %vm619 = vcmp.eq.s32.totalorder %v29, %v566
    %vm620 = vcmp.eq.s32.totalorder %v29, %v570
    %vm621 = vcmp.eq.s32.totalorder %v29, %v574
    %vm622 = vcmp.eq.s32.totalorder %v29, %v578
    %vm623 = vcmp.eq.s32.totalorder %v30, %v566
    %vm624 = vcmp.eq.s32.totalorder %v30, %v570
    %vm625 = vcmp.eq.s32.totalorder %v30, %v574
    %vm626 = vcmp.eq.s32.totalorder %v30, %v578
    %vm627 = vcmp.eq.s32.totalorder %v31, %v566
    %vm628 = vcmp.eq.s32.totalorder %v31, %v570
    %vm629 = vcmp.eq.s32.totalorder %v31, %v574
    %vm630 = vcmp.eq.s32.totalorder %v31, %v578
    %vm631 = vcmp.eq.s32.totalorder %v32, %v566
    %vm632 = vcmp.eq.s32.totalorder %v32, %v570
    %vm633 = vcmp.eq.s32.totalorder %v32, %v574
    %vm634 = vcmp.eq.s32.totalorder %v32, %v578
    %vm635 = vcmp.eq.s32.totalorder %v33, %v566
    %vm636 = vcmp.eq.s32.totalorder %v33, %v570
    %vm637 = vcmp.eq.s32.totalorder %v33, %v574
    %vm638 = vcmp.eq.s32.totalorder %v33, %v578
    %vm639 = vcmp.eq.s32.totalorder %v34, %v566
    %vm640 = vcmp.eq.s32.totalorder %v34, %v570
    %vm641 = vcmp.eq.s32.totalorder %v34, %v574
    %vm642 = vcmp.eq.s32.totalorder %v34, %v578
    %v643 = vsel %vm579, 1, 0
    %v644 = vsel %vm580, 1, 0
    %v645 = vsel %vm581, 1, 0
    %v646 = vsel %vm582, 1, 0
    %v647 = vsel %vm583, 1, 0
    %v648 = vsel %vm584, 1, 0
    %v649 = vsel %vm585, 1, 0
    %v650 = vsel %vm586, 1, 0
    %v651 = vsel %vm587, 1, 0
    %v652 = vsel %vm588, 1, 0
    %v653 = vsel %vm589, 1, 0
    %v654 = vsel %vm590, 1, 0
    %v655 = vsel %vm591, 1, 0
    %v656 = vsel %vm592, 1, 0
    %v657 = vsel %vm593, 1, 0
    %v658 = vsel %vm594, 1, 0
    %v659 = vsel %vm595, 1, 0
    %v660 = vsel %vm596, 1, 0
    %v661 = vsel %vm597, 1, 0
    %v662 = vsel %vm598, 1, 0
    %v663 = vsel %vm599, 1, 0
    %v664 = vsel %vm600, 1, 0
    %v665 = vsel %vm601, 1, 0
    %v666 = vsel %vm602, 1, 0
    %v667 = vsel %vm603, 1, 0
    %v668 = vsel %vm604, 1, 0
    %v669 = vsel %vm605, 1, 0
    %v670 = vsel %vm606, 1, 0
    %v671 = vsel %vm607, 1, 0
    %v672 = vsel %vm608, 1, 0
    %v673 = vsel %vm609, 1, 0
    %v674 = vsel %vm610, 1, 0
    %v675 = vsel %vm611, 1, 0
    %v676 = vsel %vm612, 1, 0
    %v677 = vsel %vm613, 1, 0
    %v678 = vsel %vm614, 1, 0
    %v679 = vsel %vm615, 1, 0
    %v680 = vsel %vm616, 1, 0
    %v681 = vsel %vm617, 1, 0
    %v682 = vsel %vm618, 1, 0
    %v683 = vsel %vm619, 1, 0
    %v684 = vsel %vm620, 1, 0
    %v685 = vsel %vm621, 1, 0
    %v686 = vsel %vm622, 1, 0
    %v687 = vsel %vm623, 1, 0
    %v688 = vsel %vm624, 1, 0
    %v689 = vsel %vm625, 1, 0
    %v690 = vsel %vm626, 1, 0
    %v691 = vsel %vm627, 1, 0
    %v692 = vsel %vm628, 1, 0
    %v693 = vsel %vm629, 1, 0
    %v694 = vsel %vm630, 1, 0
    %v695 = vsel %vm631, 1, 0
    %v696 = vsel %vm632, 1, 0
    %v697 = vsel %vm633, 1, 0
    %v698 = vsel %vm634, 1, 0
    %v699 = vsel %vm635, 1, 0
    %v700 = vsel %vm636, 1, 0
    %v701 = vsel %vm637, 1, 0
    %v702 = vsel %vm638, 1, 0
    %v703 = vsel %vm639, 1, 0
    %v704 = vsel %vm640, 1, 0
    %v705 = vsel %vm641, 1, 0
    %v706 = vsel %vm642, 1, 0
    %v707 = vcvt.s32.f32 %v643
    %v708 = vcvt.s32.f32 %v644
    %v709 = vcvt.s32.f32 %v645
    %v710 = vcvt.s32.f32 %v646
    %v711 = vcvt.s32.f32 %v647
    %v712 = vcvt.s32.f32 %v648
    %v713 = vcvt.s32.f32 %v649
    %v714 = vcvt.s32.f32 %v650
    %v715 = vcvt.s32.f32 %v651
    %v716 = vcvt.s32.f32 %v652
    %v717 = vcvt.s32.f32 %v653
    %v718 = vcvt.s32.f32 %v654
    %v719 = vcvt.s32.f32 %v655
    %v720 = vcvt.s32.f32 %v656
    %v721 = vcvt.s32.f32 %v657
    %v722 = vcvt.s32.f32 %v658
    %v723 = vcvt.s32.f32 %v659
    %v724 = vcvt.s32.f32 %v660
    %v725 = vcvt.s32.f32 %v661
    %v726 = vcvt.s32.f32 %v662
    %v727 = vcvt.s32.f32 %v663
    %v728 = vcvt.s32.f32 %v664
    %v729 = vcvt.s32.f32 %v665
    %v730 = vcvt.s32.f32 %v666
    %v731 = vcvt.s32.f32 %v667
    %v732 = vcvt.s32.f32 %v668
    %v733 = vcvt.s32.f32 %v669
    %v734 = vcvt.s32.f32 %v670
    %v735 = vcvt.s32.f32 %v671
    %v736 = vcvt.s32.f32 %v672
    %v737 = vcvt.s32.f32 %v673
    %v738 = vcvt.s32.f32 %v674
    %v739 = vcvt.s32.f32 %v675
    %v740 = vcvt.s32.f32 %v676
    %v741 = vcvt.s32.f32 %v677
    %v742 = vcvt.s32.f32 %v678
    %v743 = vcvt.s32.f32 %v679
    %v744 = vcvt.s32.f32 %v680
    %v745 = vcvt.s32.f32 %v681
    %v746 = vcvt.s32.f32 %v682
    %v747 = vcvt.s32.f32 %v683
    %v748 = vcvt.s32.f32 %v684
    %v749 = vcvt.s32.f32 %v685
    %v750 = vcvt.s32.f32 %v686
    %v751 = vcvt.s32.f32 %v687
    %v752 = vcvt.s32.f32 %v688
    %v753 = vcvt.s32.f32 %v689
    %v754 = vcvt.s32.f32 %v690
    %v755 = vcvt.s32.f32 %v691
    %v756 = vcvt.s32.f32 %v692
    %v757 = vcvt.s32.f32 %v693
    %v758 = vcvt.s32.f32 %v694
    %v759 = vcvt.s32.f32 %v695
    %v760 = vcvt.s32.f32 %v696
    %v761 = vcvt.s32.f32 %v697
    %v762 = vcvt.s32.f32 %v698
    %v763 = vcvt.s32.f32 %v699
    %v764 = vcvt.s32.f32 %v700
    %v765 = vcvt.s32.f32 %v701
    %v766 = vcvt.s32.f32 %v702
    %v767 = vcvt.s32.f32 %v703
    %v768 = vcvt.s32.f32 %v704
    %v769 = vcvt.s32.f32 %v705
    %v770 = vcvt.s32.f32 %v706
    %v771 = vadd.f32 %v483, %v707
    %v772 = vadd.f32 %v484, %v708
    %v773 = vadd.f32 %v485, %v709
    %v774 = vadd.f32 %v486, %v710
    %v775 = vadd.f32 %v487, %v711
    %v776 = vadd.f32 %v488, %v712
    %v777 = vadd.f32 %v489, %v713
    %v778 = vadd.f32 %v490, %v714
    %v779 = vadd.f32 %v491, %v715
    %v780 = vadd.f32 %v492, %v716
    %v781 = vadd.f32 %v493, %v717
    %v782 = vadd.f32 %v494, %v718
    %v783 = vadd.f32 %v495, %v719
    %v784 = vadd.f32 %v496, %v720
    %v785 = vadd.f32 %v497, %v721
    %v786 = vadd.f32 %v498, %v722
    %v787 = vadd.f32 %v499, %v723
    %v788 = vadd.f32 %v500, %v724
    %v789 = vadd.f32 %v501, %v725
    %v790 = vadd.f32 %v502, %v726
    %v791 = vadd.f32 %v503, %v727
    %v792 = vadd.f32 %v504, %v728
    %v793 = vadd.f32 %v505, %v729
    %v794 = vadd.f32 %v506, %v730
    %v795 = vadd.f32 %v507, %v731
    %v796 = vadd.f32 %v508, %v732
    %v797 = vadd.f32 %v509, %v733
    %v798 = vadd.f32 %v510, %v734
    %v799 = vadd.f32 %v511, %v735
    %v800 = vadd.f32 %v512, %v736
    %v801 = vadd.f32 %v513, %v737
    %v802 = vadd.f32 %v514, %v738
    %v803 = vadd.f32 %v515, %v739
    %v804 = vadd.f32 %v516, %v740
    %v805 = vadd.f32 %v517, %v741
    %v806 = vadd.f32 %v518, %v742
    %v807 = vadd.f32 %v519, %v743
    %v808 = vadd.f32 %v520, %v744
    %v809 = vadd.f32 %v521, %v745
    %v810 = vadd.f32 %v522, %v746
    %v811 = vadd.f32 %v523, %v747
    %v812 = vadd.f32 %v524, %v748
    %v813 = vadd.f32 %v525, %v749
    %v814 = vadd.f32 %v526, %v750
    %v815 = vadd.f32 %v527, %v751
    %v816 = vadd.f32 %v528, %v752
    %v817 = vadd.f32 %v529, %v753
    %v818 = vadd.f32 %v530, %v754
    %v819 = vadd.f32 %v531, %v755
    %v820 = vadd.f32 %v532, %v756
    %v821 = vadd.f32 %v533, %v757
    %v822 = vadd.f32 %v534, %v758
    %v823 = vadd.f32 %v535, %v759
    %v824 = vadd.f32 %v536, %v760
    %v825 = vadd.f32 %v537, %v761
    %v826 = vadd.f32 %v538, %v762
    %v827 = vadd.f32 %v539, %v763
    %v828 = vadd.f32 %v540, %v764
    %v829 = vadd.f32 %v541, %v765
    %v830 = vadd.f32 %v542, %v766
    %v831 = vadd.f32 %v543, %v767
    %v832 = vadd.f32 %v544, %v768
    %v833 = vadd.f32 %v545, %v769
    %v834 = vadd.f32 %v546, %v770
    %v835 = vlaneseq
    %v836 = vshrl.u32 %v835, 7
    %v837 = vsub.s32 3, %v836
    %v838 = vrot.slane %v16, %v837
    %v839 = vlaneseq
    %v840 = vshrl.u32 %v839, 7
    %v841 = vsub.s32 7, %v840
    %v842 = vrot.slane %v16, %v841
    %v843 = vlaneseq
    %v844 = vshrl.u32 %v843, 7
    %v845 = vsub.s32 3, %v844
    %v846 = vrot.slane %v17, %v845
    %v847 = vlaneseq
    %v848 = vshrl.u32 %v847, 7
    %v849 = vsub.s32 7, %v848
    %v850 = vrot.slane %v17, %v849
    %v851 = vlaneseq
    %v852 = vshrl.u32 %v851, 7
    %v853 = vsub.s32 3, %v852
    %v854 = vrot.slane %v838, %v853
    %v855 = vlaneseq
    %v856 = vshrl.u32 %v855, 7
    %v857 = vsub.s32 3, %v856
    %v858 = vrot.slane %v842, %v857
    %v859 = vlaneseq
    %v860 = vshrl.u32 %v859, 7
    %v861 = vsub.s32 3, %v860
    %v862 = vrot.slane %v846, %v861
    %v863 = vlaneseq
    %v864 = vshrl.u32 %v863, 7
    %v865 = vsub.s32 3, %v864
    %v866 = vrot.slane %v850, %v865
    %vm867 = vcmp.eq.s32.totalorder %v19, %v854
    %vm868 = vcmp.eq.s32.totalorder %v19, %v858
    %vm869 = vcmp.eq.s32.totalorder %v19, %v862
    %vm870 = vcmp.eq.s32.totalorder %v19, %v866
    %vm871 = vcmp.eq.s32.totalorder %v20, %v854
    %vm872 = vcmp.eq.s32.totalorder %v20, %v858
    %vm873 = vcmp.eq.s32.totalorder %v20, %v862
    %vm874 = vcmp.eq.s32.totalorder %v20, %v866
    %vm875 = vcmp.eq.s32.totalorder %v21, %v854
    %vm876 = vcmp.eq.s32.totalorder %v21, %v858
    %vm877 = vcmp.eq.s32.totalorder %v21, %v862
    %vm878 = vcmp.eq.s32.totalorder %v21, %v866
    %vm879 = vcmp.eq.s32.totalorder %v22, %v854
    %vm880 = vcmp.eq.s32.totalorder %v22, %v858
    %vm881 = vcmp.eq.s32.totalorder %v22, %v862
    %vm882 = vcmp.eq.s32.totalorder %v22, %v866
    %vm883 = vcmp.eq.s32.totalorder %v23, %v854
    %vm884 = vcmp.eq.s32.totalorder %v23, %v858
    %vm885 = vcmp.eq.s32.totalorder %v23, %v862
    %vm886 = vcmp.eq.s32.totalorder %v23, %v866
    %vm887 = vcmp.eq.s32.totalorder %v24, %v854
    %vm888 = vcmp.eq.s32.totalorder %v24, %v858
    %vm889 = vcmp.eq.s32.totalorder %v24, %v862
    %vm890 = vcmp.eq.s32.totalorder %v24, %v866
    %vm891 = vcmp.eq.s32.totalorder %v25, %v854
    %vm892 = vcmp.eq.s32.totalorder %v25, %v858
    %vm893 = vcmp.eq.s32.totalorder %v25, %v862
    %vm894 = vcmp.eq.s32.totalorder %v25, %v866
    %vm895 = vcmp.eq.s32.totalorder %v26, %v854
    %vm896 = vcmp.eq.s32.totalorder %v26, %v858
    %vm897 = vcmp.eq.s32.totalorder %v26, %v862
    %vm898 = vcmp.eq.s32.totalorder %v26, %v866
    %vm899 = vcmp.eq.s32.totalorder %v27, %v854
    %vm900 = vcmp.eq.s32.totalorder %v27, %v858
    %vm901 = vcmp.eq.s32.totalorder %v27, %v862
    %vm902 = vcmp.eq.s32.totalorder %v27, %v866
    %vm903 = vcmp.eq.s32.totalorder %v28, %v854
    %vm904 = vcmp.eq.s32.totalorder %v28, %v858
    %vm905 = vcmp.eq.s32.totalorder %v28, %v862
    %vm906 = vcmp.eq.s32.totalorder %v28, %v866
    %vm907 = vcmp.eq.s32.totalorder %v29, %v854
    %vm908 = vcmp.eq.s32.totalorder %v29, %v858
    %vm909 = vcmp.eq.s32.totalorder %v29, %v862
    %vm910 = vcmp.eq.s32.totalorder %v29, %v866
    %vm911 = vcmp.eq.s32.totalorder %v30, %v854
    %vm912 = vcmp.eq.s32.totalorder %v30, %v858
    %vm913 = vcmp.eq.s32.totalorder %v30, %v862
    %vm914 = vcmp.eq.s32.totalorder %v30, %v866
    %vm915 = vcmp.eq.s32.totalorder %v31, %v854
    %vm916 = vcmp.eq.s32.totalorder %v31, %v858
    %vm917 = vcmp.eq.s32.totalorder %v31, %v862
    %vm918 = vcmp.eq.s32.totalorder %v31, %v866
    %vm919 = vcmp.eq.s32.totalorder %v32, %v854
    %vm920 = vcmp.eq.s32.totalorder %v32, %v858
    %vm921 = vcmp.eq.s32.totalorder %v32, %v862
    %vm922 = vcmp.eq.s32.totalorder %v32, %v866
    %vm923 = vcmp.eq.s32.totalorder %v33, %v854
    %vm924 = vcmp.eq.s32.totalorder %v33, %v858
    %vm925 = vcmp.eq.s32.totalorder %v33, %v862
    %vm926 = vcmp.eq.s32.totalorder %v33, %v866
    %vm927 = vcmp.eq.s32.totalorder %v34, %v854
    %vm928 = vcmp.eq.s32.totalorder %v34, %v858
    %vm929 = vcmp.eq.s32.totalorder %v34, %v862
    %vm930 = vcmp.eq.s32.totalorder %v34, %v866
    %v931 = vsel %vm867, 1, 0
    %v932 = vsel %vm868, 1, 0
    %v933 = vsel %vm869, 1, 0
    %v934 = vsel %vm870, 1, 0
    %v935 = vsel %vm871, 1, 0
    %v936 = vsel %vm872, 1, 0
    %v937 = vsel %vm873, 1, 0
    %v938 = vsel %vm874, 1, 0
    %v939 = vsel %vm875, 1, 0
    %v940 = vsel %vm876, 1, 0
    %v941 = vsel %vm877, 1, 0
    %v942 = vsel %vm878, 1, 0
    %v943 = vsel %vm879, 1, 0
    %v944 = vsel %vm880, 1, 0
    %v945 = vsel %vm881, 1, 0
    %v946 = vsel %vm882, 1, 0
    %v947 = vsel %vm883, 1, 0
    %v948 = vsel %vm884, 1, 0
    %v949 = vsel %vm885, 1, 0
    %v950 = vsel %vm886, 1, 0
    %v951 = vsel %vm887, 1, 0
    %v952 = vsel %vm888, 1, 0
    %v953 = vsel %vm889, 1, 0
    %v954 = vsel %vm890, 1, 0
    %v955 = vsel %vm891, 1, 0
    %v956 = vsel %vm892, 1, 0
    %v957 = vsel %vm893, 1, 0
    %v958 = vsel %vm894, 1, 0
    %v959 = vsel %vm895, 1, 0
    %v960 = vsel %vm896, 1, 0
    %v961 = vsel %vm897, 1, 0
    %v962 = vsel %vm898, 1, 0
    %v963 = vsel %vm899, 1, 0
    %v964 = vsel %vm900, 1, 0
    %v965 = vsel %vm901, 1, 0
    %v966 = vsel %vm902, 1, 0
    %v967 = vsel %vm903, 1, 0
    %v968 = vsel %vm904, 1, 0
    %v969 = vsel %vm905, 1, 0
    %v970 = vsel %vm906, 1, 0
    %v971 = vsel %vm907, 1, 0
    %v972 = vsel %vm908, 1, 0
    %v973 = vsel %vm909, 1, 0
    %v974 = vsel %vm910, 1, 0
    %v975 = vsel %vm911, 1, 0
    %v976 = vsel %vm912, 1, 0
    %v977 = vsel %vm913, 1, 0
    %v978 = vsel %vm914, 1, 0
    %v979 = vsel %vm915, 1, 0
    %v980 = vsel %vm916, 1, 0
    %v981 = vsel %vm917, 1, 0
    %v982 = vsel %vm918, 1, 0
    %v983 = vsel %vm919, 1, 0
    %v984 = vsel %vm920, 1, 0
    %v985 = vsel %vm921, 1, 0
    %v986 = vsel %vm922, 1, 0
    %v987 = vsel %vm923, 1, 0
    %v988 = vsel %vm924, 1, 0
    %v989 = vsel %vm925, 1, 0
    %v990 = vsel %vm926, 1, 0
    %v991 = vsel %vm927, 1, 0
    %v992 = vsel %vm928, 1, 0
    %v993 = vsel %vm929, 1, 0
    %v994 = vsel %vm930, 1, 0
    %v995 = vcvt.s32.f32 %v931
    %v996 = vcvt.s32.f32 %v932
    %v997 = vcvt.s32.f32 %v933
    %v998 = vcvt.s32.f32 %v934
    %v999 = vcvt.s32.f32 %v935
    %v1000 = vcvt.s32.f32 %v936
    %v1001 = vcvt.s32.f32 %v937
    %v1002 = vcvt.s32.f32 %v938
    %v1003 = vcvt.s32.f32 %v939
    %v1004 = vcvt.s32.f32 %v940
    %v1005 = vcvt.s32.f32 %v941
    %v1006 = vcvt.s32.f32 %v942
    %v1007 = vcvt.s32.f32 %v943
    %v1008 = vcvt.s32.f32 %v944
    %v1009 = vcvt.s32.f32 %v945
    %v1010 = vcvt.s32.f32 %v946
    %v1011 = vcvt.s32.f32 %v947
    %v1012 = vcvt.s32.f32 %v948
    %v1013 = vcvt.s32.f32 %v949
    %v1014 = vcvt.s32.f32 %v950
    %v1015 = vcvt.s32.f32 %v951
    %v1016 = vcvt.s32.f32 %v952
    %v1017 = vcvt.s32.f32 %v953
    %v1018 = vcvt.s32.f32 %v954
    %v1019 = vcvt.s32.f32 %v955
    %v1020 = vcvt.s32.f32 %v956
    %v1021 = vcvt.s32.f32 %v957
    %v1022 = vcvt.s32.f32 %v958
    %v1023 = vcvt.s32.f32 %v959
    %v1024 = vcvt.s32.f32 %v960
    %v1025 = vcvt.s32.f32 %v961
    %v1026 = vcvt.s32.f32 %v962
    %v1027 = vcvt.s32.f32 %v963
    %v1028 = vcvt.s32.f32 %v964
    %v1029 = vcvt.s32.f32 %v965
    %v1030 = vcvt.s32.f32 %v966
    %v1031 = vcvt.s32.f32 %v967
    %v1032 = vcvt.s32.f32 %v968
    %v1033 = vcvt.s32.f32 %v969
    %v1034 = vcvt.s32.f32 %v970
    %v1035 = vcvt.s32.f32 %v971
    %v1036 = vcvt.s32.f32 %v972
    %v1037 = vcvt.s32.f32 %v973
    %v1038 = vcvt.s32.f32 %v974
    %v1039 = vcvt.s32.f32 %v975
    %v1040 = vcvt.s32.f32 %v976
    %v1041 = vcvt.s32.f32 %v977
    %v1042 = vcvt.s32.f32 %v978
    %v1043 = vcvt.s32.f32 %v979
    %v1044 = vcvt.s32.f32 %v980
    %v1045 = vcvt.s32.f32 %v981
    %v1046 = vcvt.s32.f32 %v982
    %v1047 = vcvt.s32.f32 %v983
    %v1048 = vcvt.s32.f32 %v984
    %v1049 = vcvt.s32.f32 %v985
    %v1050 = vcvt.s32.f32 %v986
    %v1051 = vcvt.s32.f32 %v987
    %v1052 = vcvt.s32.f32 %v988
    %v1053 = vcvt.s32.f32 %v989
    %v1054 = vcvt.s32.f32 %v990
    %v1055 = vcvt.s32.f32 %v991
    %v1056 = vcvt.s32.f32 %v992
    %v1057 = vcvt.s32.f32 %v993
    %v1058 = vcvt.s32.f32 %v994
    %v1059 = vadd.f32 %v771, %v995
    %v1060 = vadd.f32 %v772, %v996
    %v1061 = vadd.f32 %v773, %v997
    %v1062 = vadd.f32 %v774, %v998
    %v1063 = vadd.f32 %v775, %v999
    %v1064 = vadd.f32 %v776, %v1000
    %v1065 = vadd.f32 %v777, %v1001
    %v1066 = vadd.f32 %v778, %v1002
    %v1067 = vadd.f32 %v779, %v1003
    %v1068 = vadd.f32 %v780, %v1004
    %v1069 = vadd.f32 %v781, %v1005
    %v1070 = vadd.f32 %v782, %v1006
    %v1071 = vadd.f32 %v783, %v1007
    %v1072 = vadd.f32 %v784, %v1008
    %v1073 = vadd.f32 %v785, %v1009
    %v1074 = vadd.f32 %v786, %v1010
    %v1075 = vadd.f32 %v787, %v1011
    %v1076 = vadd.f32 %v788, %v1012
    %v1077 = vadd.f32 %v789, %v1013
    %v1078 = vadd.f32 %v790, %v1014
    %v1079 = vadd.f32 %v791, %v1015
    %v1080 = vadd.f32 %v792, %v1016
    %v1081 = vadd.f32 %v793, %v1017
    %v1082 = vadd.f32 %v794, %v1018
    %v1083 = vadd.f32 %v795, %v1019
    %v1084 = vadd.f32 %v796, %v1020
    %v1085 = vadd.f32 %v797, %v1021
    %v1086 = vadd.f32 %v798, %v1022
    %v1087 = vadd.f32 %v799, %v1023
    %v1088 = vadd.f32 %v800, %v1024
    %v1089 = vadd.f32 %v801, %v1025
    %v1090 = vadd.f32 %v802, %v1026
    %v1091 = vadd.f32 %v803, %v1027
    %v1092 = vadd.f32 %v804, %v1028
    %v1093 = vadd.f32 %v805, %v1029
    %v1094 = vadd.f32 %v806, %v1030
    %v1095 = vadd.f32 %v807, %v1031
    %v1096 = vadd.f32 %v808, %v1032
    %v1097 = vadd.f32 %v809, %v1033
    %v1098 = vadd.f32 %v810, %v1034
    %v1099 = vadd.f32 %v811, %v1035
    %v1100 = vadd.f32 %v812, %v1036
    %v1101 = vadd.f32 %v813, %v1037
    %v1102 = vadd.f32 %v814, %v1038
    %v1103 = vadd.f32 %v815, %v1039
    %v1104 = vadd.f32 %v816, %v1040
    %v1105 = vadd.f32 %v817, %v1041
    %v1106 = vadd.f32 %v818, %v1042
    %v1107 = vadd.f32 %v819, %v1043
    %v1108 = vadd.f32 %v820, %v1044
    %v1109 = vadd.f32 %v821, %v1045
    %v1110 = vadd.f32 %v822, %v1046
    %v1111 = vadd.f32 %v823, %v1047
    %v1112 = vadd.f32 %v824, %v1048
    %v1113 = vadd.f32 %v825, %v1049
    %v1114 = vadd.f32 %v826, %v1050
    %v1115 = vadd.f32 %v827, %v1051
    %v1116 = vadd.f32 %v828, %v1052
    %v1117 = vadd.f32 %v829, %v1053
    %v1118 = vadd.f32 %v830, %v1054
    %v1119 = vadd.f32 %v831, %v1055
    %v1120 = vadd.f32 %v832, %v1056
    %v1121 = vadd.f32 %v833, %v1057
    %v1122 = vadd.f32 %v834, %v1058
    %v1123 = vld [vmem:[%s1] sm:$0xff]
    %v1124 = vld [vmem:[%s1 + $0x8] sm:$0xff]
    %v1125 = vld [vmem:[%s1 + $0x10] sm:$0xff]
    %v1126 = vld [vmem:[%s1 + $0x18] sm:$0xff]
    %v1127 = vld [vmem:[%s1 + $0x20] sm:$0xff]
    %1128 = vmatprep.subr.mxu0 %v1060
    %1129 = vmatpush1.msra.mxu0 %v1059
    %1130 = vmatprep.subr.mxu0 %v1064
    %1131 = vmatpush1.msra.mxu0 %v1063
    %1132 = vmatprep.subr.mxu0 %v1068
    %1133 = vmatpush1.msra.mxu0 %v1067
    %1134 = vmatprep.subr.mxu0 %v1072
    %1135 = vmatpush1.msra.mxu0 %v1071
    %1136 = vmatprep.subr.mxu0 %v1076
    %1137 = vmatpush1.msra.mxu0 %v1075
    %1138 = vmatprep.subr.mxu0 %v1080
    %1139 = vmatpush1.msra.mxu0 %v1079
    %1140 = vmatprep.subr.mxu0 %v1084
    %1141 = vmatpush1.msra.mxu0 %v1083
    %1142 = vmatprep.subr.mxu0 %v1088
    %1143 = vmatpush1.msra.mxu0 %v1087
    %1144 = vmatprep.subr.mxu0 %v1092
    %1145 = vmatpush1.msra.mxu0 %v1091
    %1146 = vmatprep.subr.mxu0 %v1096
    %1147 = vmatpush1.msra.mxu0 %v1095
    %1148 = vmatprep.subr.mxu0 %v1100
    %1149 = vmatpush1.msra.mxu0 %v1099
    %1150 = vmatprep.subr.mxu0 %v1104
    %1151 = vmatpush1.msra.mxu0 %v1103
    %1152 = vmatprep.subr.mxu0 %v1108
    %1153 = vmatpush1.msra.mxu0 %v1107
    %1154 = vmatprep.subr.mxu0 %v1112
    %1155 = vmatpush1.msra.mxu0 %v1111
    %1156 = vmatprep.subr.mxu0 %v1116
    %1157 = vmatpush1.msra.mxu0 %v1115
    %1158 = vmatprep.subr.mxu0 %v1120
    %1159 = vmatpush1.msra.mxu0 %v1119
    %1160 = vmatprep.subr.mxu0 0.0
    %1161 = vmatpush1.msra.mxu0 0.0
    %1162 = vmatprep.subr.mxu0 0.0
    %1163 = vmatpush1.msra.mxu0 0.0
    %1164 = vmatprep.subr.mxu0 0.0
    %1165 = vmatpush1.msra.mxu0 0.0
    %1166 = vmatprep.subr.mxu0 0.0
    %1167 = vmatpush1.msra.mxu0 0.0
    %1168 = vmatprep.subr.mxu0 0.0
    %1169 = vmatpush1.msra.mxu0 0.0
    %1170 = vmatprep.subr.mxu0 0.0
    %1171 = vmatpush1.msra.mxu0 0.0
    %1172 = vmatprep.subr.mxu0 0.0
    %1173 = vmatpush1.msra.mxu0 0.0
    %1174 = vmatprep.subr.mxu0 0.0
    %1175 = vmatpush1.msra.mxu0 0.0
    %1176 = vmatprep.subr.mxu0 0.0
    %1177 = vmatpush1.msra.mxu0 0.0
    %1178 = vmatprep.subr.mxu0 0.0
    %1179 = vmatpush1.msra.mxu0 0.0
    %1180 = vmatprep.subr.mxu0 0.0
    %1181 = vmatpush1.msra.mxu0 0.0
    %1182 = vmatprep.subr.mxu0 0.0
    %1183 = vmatpush1.msra.mxu0 0.0
    %1184 = vmatprep.subr.mxu0 0.0
    %1185 = vmatpush1.msra.mxu0 0.0
    %1186 = vmatprep.subr.mxu0 0.0
    %1187 = vmatpush1.msra.mxu0 0.0
    %1188 = vmatprep.subr.mxu0 0.0
    %1189 = vmatpush1.msra.mxu0 0.0
    %1190 = vmatprep.subr.mxu0 0.0
    %1191 = vmatpush1.msra.mxu0 0.0
    %1192 = vmatprep.mubr.f32.mxu0 0.0
    %1193 = vmatmul.mubr.f32.gmra.mrb[0].mxu0 %v1123
    %v1194 = vpop.f32.mrb[0].mxu0
    %v1195 = vadd.f32 0.0, %v1194
    %v1196 = vpop.f32.mrb[0].mxu0
    %v1197 = vadd.f32 0.0, %v1196
    %1198 = vmatprep.mubr.f32.mxu0 0.0
    %1199 = vmatmul.mubr.f32.gmra.mrb[0].mxu0 %v1124
    %v1200 = vpop.f32.mrb[0].mxu0
    %v1201 = vadd.f32 0.0, %v1200
    %v1202 = vpop.f32.mrb[0].mxu0
    %v1203 = vadd.f32 0.0, %v1202
    %1204 = vmatprep.mubr.f32.mxu0 0.0
    %1205 = vmatmul.mubr.f32.gmra.mrb[0].mxu0 %v1125
    %v1206 = vpop.f32.mrb[0].mxu0
    %v1207 = vadd.f32 0.0, %v1206
    %v1208 = vpop.f32.mrb[0].mxu0
    %v1209 = vadd.f32 0.0, %v1208
    %1210 = vmatprep.mubr.f32.mxu0 0.0
    %1211 = vmatmul.mubr.f32.gmra.mrb[0].mxu0 %v1126
    %v1212 = vpop.f32.mrb[0].mxu0
    %v1213 = vadd.f32 0.0, %v1212
    %v1214 = vpop.f32.mrb[0].mxu0
    %v1215 = vadd.f32 0.0, %v1214
    %1216 = vmatprep.mubr.f32.mxu0 0.0
    %1217 = vmatmul.mubr.f32.gmra.mrb[0].mxu0 %v1127
    %v1218 = vpop.f32.mrb[0].mxu0
    %v1219 = vadd.f32 0.0, %v1218
    %v1220 = vpop.f32.mrb[0].mxu0
    %v1221 = vadd.f32 0.0, %v1220
    %1222 = vdwg.mxu0
    %1223 = vmatprep.subr.mxu0 %v1062
    %1224 = vmatpush1.msra.mxu0 %v1061
    %1225 = vmatprep.subr.mxu0 %v1066
    %1226 = vmatpush1.msra.mxu0 %v1065
    %1227 = vmatprep.subr.mxu0 %v1070
    %1228 = vmatpush1.msra.mxu0 %v1069
    %1229 = vmatprep.subr.mxu0 %v1074
    %1230 = vmatpush1.msra.mxu0 %v1073
    %1231 = vmatprep.subr.mxu0 %v1078
    %1232 = vmatpush1.msra.mxu0 %v1077
    %1233 = vmatprep.subr.mxu0 %v1082
    %1234 = vmatpush1.msra.mxu0 %v1081
    %1235 = vmatprep.subr.mxu0 %v1086
    %1236 = vmatpush1.msra.mxu0 %v1085
    %1237 = vmatprep.subr.mxu0 %v1090
    %1238 = vmatpush1.msra.mxu0 %v1089
    %1239 = vmatprep.subr.mxu0 %v1094
    %1240 = vmatpush1.msra.mxu0 %v1093
    %1241 = vmatprep.subr.mxu0 %v1098
    %1242 = vmatpush1.msra.mxu0 %v1097
    %1243 = vmatprep.subr.mxu0 %v1102
    %1244 = vmatpush1.msra.mxu0 %v1101
    %1245 = vmatprep.subr.mxu0 %v1106
    %1246 = vmatpush1.msra.mxu0 %v1105
    %1247 = vmatprep.subr.mxu0 %v1110
    %1248 = vmatpush1.msra.mxu0 %v1109
    %1249 = vmatprep.subr.mxu0 %v1114
    %1250 = vmatpush1.msra.mxu0 %v1113
    %1251 = vmatprep.subr.mxu0 %v1118
    %1252 = vmatpush1.msra.mxu0 %v1117
    %1253 = vmatprep.subr.mxu0 %v1122
    %1254 = vmatpush1.msra.mxu0 %v1121
    %1255 = vmatprep.subr.mxu0 0.0
    %1256 = vmatpush1.msra.mxu0 0.0
    %1257 = vmatprep.subr.mxu0 0.0
    %1258 = vmatpush1.msra.mxu0 0.0
    %1259 = vmatprep.subr.mxu0 0.0
    %1260 = vmatpush1.msra.mxu0 0.0
    %1261 = vmatprep.subr.mxu0 0.0
    %1262 = vmatpush1.msra.mxu0 0.0
    %1263 = vmatprep.subr.mxu0 0.0
    %1264 = vmatpush1.msra.mxu0 0.0
    %1265 = vmatprep.subr.mxu0 0.0
    %1266 = vmatpush1.msra.mxu0 0.0
    %1267 = vmatprep.subr.mxu0 0.0
    %1268 = vmatpush1.msra.mxu0 0.0
    %1269 = vmatprep.subr.mxu0 0.0
    %1270 = vmatpush1.msra.mxu0 0.0
    %1271 = vmatprep.subr.mxu0 0.0
    %1272 = vmatpush1.msra.mxu0 0.0
    %1273 = vmatprep.subr.mxu0 0.0
    %1274 = vmatpush1.msra.mxu0 0.0
    %1275 = vmatprep.subr.mxu0 0.0
    %1276 = vmatpush1.msra.mxu0 0.0
    %1277 = vmatprep.subr.mxu0 0.0
    %1278 = vmatpush1.msra.mxu0 0.0
    %1279 = vmatprep.subr.mxu0 0.0
    %1280 = vmatpush1.msra.mxu0 0.0
    %1281 = vmatprep.subr.mxu0 0.0
    %1282 = vmatpush1.msra.mxu0 0.0
    %1283 = vmatprep.subr.mxu0 0.0
    %1284 = vmatpush1.msra.mxu0 0.0
    %1285 = vmatprep.subr.mxu0 0.0
    %1286 = vmatpush1.msra.mxu0 0.0
    %1287 = vmatprep.mubr.f32.mxu0 0.0
    %1288 = vmatmul.mubr.f32.gmra.mrb[0].mxu0 %v1123
    %v1289 = vpop.f32.mrb[0].mxu0
    %v1290 = vadd.f32 0.0, %v1289
    %v1291 = vpop.f32.mrb[0].mxu0
    %v1292 = vadd.f32 0.0, %v1291
    %1293 = vmatprep.mubr.f32.mxu0 0.0
    %1294 = vmatmul.mubr.f32.gmra.mrb[0].mxu0 %v1124
    %v1295 = vpop.f32.mrb[0].mxu0
    %v1296 = vadd.f32 0.0, %v1295
    %v1297 = vpop.f32.mrb[0].mxu0
    %v1298 = vadd.f32 0.0, %v1297
    %1299 = vmatprep.mubr.f32.mxu0 0.0
    %1300 = vmatmul.mubr.f32.gmra.mrb[0].mxu0 %v1125
    %v1301 = vpop.f32.mrb[0].mxu0
    %v1302 = vadd.f32 0.0, %v1301
    %v1303 = vpop.f32.mrb[0].mxu0
    %v1304 = vadd.f32 0.0, %v1303
    %1305 = vmatprep.mubr.f32.mxu0 0.0
    %1306 = vmatmul.mubr.f32.gmra.mrb[0].mxu0 %v1126
    %v1307 = vpop.f32.mrb[0].mxu0
    %v1308 = vadd.f32 0.0, %v1307
    %v1309 = vpop.f32.mrb[0].mxu0
    %v1310 = vadd.f32 0.0, %v1309
    %1311 = vmatprep.mubr.f32.mxu0 0.0
    %1312 = vmatmul.mubr.f32.gmra.mrb[0].mxu0 %v1127
    %v1313 = vpop.f32.mrb[0].mxu0
    %v1314 = vadd.f32 0.0, %v1313
    %v1315 = vpop.f32.mrb[0].mxu0
    %v1316 = vadd.f32 0.0, %v1315
    %1317 = vdwg.mxu0
    %v1318 = vmul.f32 %v1195, %v1195
    %v1319 = vmul.f32 %v1197, %v1197
    %v1320 = vmul.f32 %v1290, %v1290
    %v1321 = vmul.f32 %v1292, %v1292
    %v1322 = vmul.f32 %v1201, %v1201
    %v1323 = vmul.f32 %v1203, %v1203
    %v1324 = vmul.f32 %v1296, %v1296
    %v1325 = vmul.f32 %v1298, %v1298
    %v1326 = vsub.f32 %v1318, %v1207
    %v1327 = vsub.f32 %v1319, %v1209
    %v1328 = vsub.f32 %v1320, %v1302
    %v1329 = vsub.f32 %v1321, %v1304
    %v1330 = vsub.f32 %v1322, %v1213
    %v1331 = vsub.f32 %v1323, %v1215
    %v1332 = vsub.f32 %v1324, %v1308
    %v1333 = vsub.f32 %v1325, %v1310
    %v1334 = vadd.f32 %v1326, %v1330
    %v1335 = vrot.slane %v1334, 4
    %v1336 = vadd.f32 %v1334, %v1335
    %v1337 = vrot.slane %v1336, 2
    %v1338 = vadd.f32 %v1336, %v1337
    %v1339 = vrot.slane %v1338, 1
    %v1340 = vadd.f32 %v1338, %v1339
    %v1341 = vadd.f32 %v1327, %v1331
    %v1342 = vrot.slane %v1341, 4
    %v1343 = vadd.f32 %v1341, %v1342
    %v1344 = vrot.slane %v1343, 2
    %v1345 = vadd.f32 %v1343, %v1344
    %v1346 = vrot.slane %v1345, 1
    %v1347 = vadd.f32 %v1345, %v1346
    %v1348 = vadd.f32 %v1328, %v1332
    %v1349 = vrot.slane %v1348, 4
    %v1350 = vadd.f32 %v1348, %v1349
    %v1351 = vrot.slane %v1350, 2
    %v1352 = vadd.f32 %v1350, %v1351
    %v1353 = vrot.slane %v1352, 1
    %v1354 = vadd.f32 %v1352, %v1353
    %v1355 = vadd.f32 %v1329, %v1333
    %v1356 = vrot.slane %v1355, 4
    %v1357 = vadd.f32 %v1355, %v1356
    %v1358 = vrot.slane %v1357, 2
    %v1359 = vadd.f32 %v1357, %v1358
    %v1360 = vrot.slane %v1359, 1
    %v1361 = vadd.f32 %v1359, %v1360
    %v1362 = vmul.f32 %v1340, 0.5
    %v1363 = vmul.f32 %v1347, 0.5
    %v1364 = vmul.f32 %v1354, 0.5
    %v1365 = vmul.f32 %v1361, 0.5
    %v1366 = vadd.f32 %v1362, %v1219
    %v1367 = vadd.f32 %v1363, %v1221
    %v1368 = vadd.f32 %v1364, %v1314
    %v1369 = vadd.f32 %v1365, %v1316
    %s1370 = sld [smem:[#allocation2]]
    %v1371 = vstv %s1370
    %v1372 = vadd.f32 %v1366, %v1371
    %v1373 = vadd.f32 %v1367, %v1371
    %v1374 = vadd.f32 %v1368, %v1371
    %v1375 = vadd.f32 %v1369, %v1371
    %v1380 = vcombine.low %v1372, %v1373
    %v1381 = vcombine.low %v1374, %v1375
    %v1383 = vunpack.c.l.s4 1966171168
    %v1384 = vunpack.c.0.s8 %v1383
    %v1385 = vlaneseq
    %v1386 = vshrl.u32 %v1385, 7
    %v1387 = vsub.s32 %v1384, %v1386
    %v1388 = vrot.slane %v1380, %v1387
    %v1390 = vunpack.c.l.s4 1966171168
    %v1391 = vunpack.c.0.s8 %v1390
    %v1392 = vlaneseq
    %v1393 = vshrl.u32 %v1392, 7
    %v1394 = vsub.s32 %v1391, %v1393
    %v1395 = vrot.slane %v1381, %v1394
    %v1396 = vcombine.low %v1388, %v1395
    %v1398 = vunpack.c.l.s4 1966171168
    %v1399 = vunpack.c.0.s8 %v1398
    %v1400 = vlaneseq
    %v1401 = vshrl.u32 %v1400, 7
    %v1402 = vsub.s32 %v1399, %v1401
    %v1403 = vrot.slane %v1396, %v1402
    %v1405 = vlaneseq
    %vm1406 = vcmp.ge.s32.totalorder %v1405, 0
    %vm1407 = vcmp.lt.s32.totalorder %v1405, 512
    %vm1408 = vmand %vm1406, %vm1407
    %1409 = vst.msk [vmem:[#allocation3] sm:$0xf] %vm1408, %v1403
    // Predicated region
    $region14: #{fm_forward.1} parent=1 // pred_check
      _
    $region15: #{fm_forward.1} parent=1 // pred_check_branch
      %1411 = sbr.rel (0) target = $region17
    $region16: #{fm_forward.1} parent=1 // pred_region
      %s1413 = ssub.s32 64, 64
      %1414 = vsyncadd [#allocation4], %s1413
      %s1416 = sshll.u32 [#allocation3], 4
      %s1417 = int_to_ptr.vmem [resolvable:$true] %s1416
      %1419 = dma.vmem_to_hbm [thread:$0]  %s1417, 64, %s3, [#allocation4]
    $region17: #{fm_forward.1} parent=1 // pred_fallthru
      _
    // Predicated region
    $region18: #{fm_forward.1} parent=1 // pred_check
      _
    $region19: #{fm_forward.1} parent=1 // pred_check_branch
      %1421 = sbr.rel (0) target = $region21
    $region20: #{fm_forward.1} parent=1 // pred_region
      %1422 = dma.done [#allocation4], 64
    $region21: #{fm_forward.1} parent=1 // pred_fallthru
      _
    %1423 = vsyncpa [#allocation4], 1

</llo_original>
